<compile_context>
chip_gen: v7x
topology: tpu7x:2x2x1
jax: 0.10.0
libtpu: 0.0.40
codegen_flags: <defaults>
</compile_context>

<pallas_src>
import jax
import jax.numpy as jnp
from jax import lax
from jax.experimental import pallas as pl
from jax.experimental.pallas import tpu as pltpu
from functools import partial


def _round_up(x, m):
    return (x + m - 1) // m * m


# ---------- pass 1: per-tile conv + per-channel partial sum / sum-of-squares -
def _conv_stats_kernel(patch_ref, w_ref, sum_ref, ssq_ref):
    """patch_ref: (Kp, tile) bf16   im2col columns for this pixel tile
       w_ref    : (Cp, Kp)   bf16   folded conv weights (Cout padded to mult 8)
       sum_ref  : (Cp, 128)  f32    this tile's per-channel sum   (lane-bcast)
       ssq_ref  : (Cp, 128)  f32    this tile's per-channel sum of squares
    """
    y = jnp.dot(w_ref[...], patch_ref[...],
                preferred_element_type=jnp.float32)          # (Cp, tile) f32
    s = jnp.sum(y, axis=1, keepdims=True)                    # (Cp, 1)
    q = jnp.sum(y * y, axis=1, keepdims=True)
    sum_ref[...] = jnp.broadcast_to(s, sum_ref.shape)
    ssq_ref[...] = jnp.broadcast_to(q, ssq_ref.shape)


# ---------- pass 2: recompute conv, fused per-channel scale/shift + ReLU -----
def _conv_bn_relu_kernel(patch_ref, w_ref, scale_ref, shift_ref, out_ref):
    y = jnp.dot(w_ref[...], patch_ref[...],
                preferred_element_type=jnp.float32)          # (Cp, tile) f32
    s = scale_ref[:, 0:1]                                    # (Cp, 1)
    b = shift_ref[:, 0:1]
    out_ref[...] = jnp.maximum(y * s + b, 0.0)


def backbone_stem_forward(x_nchw, w_hwio, gamma, beta, *, tile_m=4096,
                          eps=1e-5):
    """x_nchw: (N, Cin, H, W) f32 -> (N, Cout, H, W) f32."""
    N, Cin, H, W = x_nchw.shape
    Cout = w_hwio.shape[-1]
    K = 9 * Cin
    Kp = _round_up(K, 8)           # K on sublanes (pad to sublane multiple)
    Cp = _round_up(Cout, 8)        # out channels on sublanes — no 128 padding
    hw = H * W

    tile_m = max(128, (tile_m // 128) * 128)
    tile = min(tile_m, _round_up(hw, 128))     # pixel-tile (lane axis)
    hw_pad = _round_up(hw, tile)
    n_tiles = hw_pad // tile

    # ---- wrapper-side glue: halo pad + 9-tap im2col, bf16, channels-major ---
    xpad = jnp.pad(x_nchw.astype(jnp.float32),
                   ((0, 0), (0, 0), (1, 1), (1, 1)))
    taps = [xpad[:, :, kh:kh + H, kw:kw + W]
            for kh in range(3) for kw in range(3)]            # each (N,Cin,H,W)
    patch = jnp.stack(taps, axis=1).reshape(N, K, hw)         # (N, 9*Cin, H*W)
    patch = patch.astype(jnp.bfloat16)
    patch = jnp.pad(patch, ((0, 0), (0, Kp - K), (0, hw_pad - hw)))

    # weights: (3,3,Cin,Cout) -> (Cp, Kp) bf16, channels on sublanes.
    w2 = w_hwio.astype(jnp.float32).reshape(K, Cout)
    w2t = jnp.pad(w2.T, ((0, Cp - Cout), (0, Kp - K))).astype(jnp.bfloat16)

    cparams = pltpu.CompilerParams(
        dimension_semantics=("parallel", "parallel"),
        vmem_limit_bytes=32 * 1024 * 1024)

    # ---- pass 1: per-tile per-channel partial sums --------------------------
    cost1 = pl.CostEstimate(
        flops=2 * N * hw_pad * Kp * Cp + 4 * N * hw_pad * Cp,
        transcendentals=0,
        bytes_accessed=2 * N * Kp * hw_pad + 2 * Cp * Kp
                       + 2 * 4 * N * n_tiles * Cp * 128)

    p_sum, p_ssq = pl.pallas_call(
        _conv_stats_kernel,
        out_shape=(jax.ShapeDtypeStruct((N, n_tiles, Cp, 128), jnp.float32),
                   jax.ShapeDtypeStruct((N, n_tiles, Cp, 128), jnp.float32)),
        grid_spec=pltpu.PrefetchScalarGridSpec(
            num_scalar_prefetch=0,
            grid=(N, n_tiles),
            in_specs=[pl.BlockSpec((None, Kp, tile), lambda n, i: (n, 0, i)),
                      pl.BlockSpec((Cp, Kp), lambda n, i: (0, 0))],
            out_specs=(pl.BlockSpec((None, None, Cp, 128),
                                    lambda n, i: (n, i, 0, 0)),
                       pl.BlockSpec((None, None, Cp, 128),
                                    lambda n, i: (n, i, 0, 0)))),
        compiler_params=cparams,
        cost_estimate=cost1,
    )(patch, w2t)

    # ---- tiny per-channel BN fold (scale/shift) in plain JAX ----------------
    # Zero-padded pixels / zero-padded K rows contribute 0 to both sums (the
    # conv has no bias), so dividing by the real pixel count gives exact
    # training-mode (biased) batch statistics.  E[y^2]-E[y]^2 is adequate here
    # (kaiming-init activations are ~zero-mean); the clamp guards the subtract.
    count = float(N * hw)
    ch_sum = jnp.sum(p_sum[..., 0], axis=(0, 1))              # (Cp,)
    ch_ssq = jnp.sum(p_ssq[..., 0], axis=(0, 1))
    mean = ch_sum / count
    var = jnp.maximum(ch_ssq / count - mean * mean, 0.0)
    inv_std = lax.rsqrt(var + eps)
    gamma_p = jnp.pad(gamma.astype(jnp.float32), (0, Cp - Cout))
    beta_p = jnp.pad(beta.astype(jnp.float32), (0, Cp - Cout))
    scale = gamma_p * inv_std                                  # (Cp,)
    shift = beta_p - mean * scale
    scale2 = jnp.broadcast_to(scale[:, None], (Cp, 128))
    shift2 = jnp.broadcast_to(shift[:, None], (Cp, 128))

    # ---- pass 2: recompute conv tile, fused scale/shift + ReLU --------------
    cost2 = pl.CostEstimate(
        flops=2 * N * hw_pad * Kp * Cp + 3 * N * hw_pad * Cp,
        transcendentals=0,
        bytes_accessed=2 * N * Kp * hw_pad + 2 * Cp * Kp + 2 * 4 * Cp * 128
                       + 4 * N * Cp * hw_pad)

    out = pl.pallas_call(
        _conv_bn_relu_kernel,
        out_shape=jax.ShapeDtypeStruct((N, Cp, hw_pad), jnp.float32),
        grid_spec=pltpu.PrefetchScalarGridSpec(
            num_scalar_prefetch=0,
            grid=(N, n_tiles),
            in_specs=[pl.BlockSpec((None, Kp, tile), lambda n, i: (n, 0, i)),
                      pl.BlockSpec((Cp, Kp), lambda n, i: (0, 0)),
                      pl.BlockSpec((Cp, 128), lambda n, i: (0, 0)),
                      pl.BlockSpec((Cp, 128), lambda n, i: (0, 0))],
            out_specs=pl.BlockSpec((None, Cp, tile), lambda n, i: (n, 0, i))),
        compiler_params=cparams,
        cost_estimate=cost2,
    )(patch, w2t, scale2, shift2)

    # Channels-major result is already NCHW up to a free reshape / slice.
    return out[:, :Cout, :hw].reshape(N, Cout, H, W)


def _reference(x_nchw, w_hwio, gamma, beta):
    """Pure-JAX reference of the same stem (correctness check)."""
    y = lax.conv_general_dilated(
        x_nchw.astype(jnp.float32),
        jnp.transpose(w_hwio, (3, 2, 0, 1)),  # OIHW
        window_strides=(1, 1), padding=((1, 1), (1, 1)),
        dimension_numbers=("NCHW", "OIHW", "NCHW"))
    mean = jnp.mean(y, axis=(0, 2, 3), keepdims=True)
    var = jnp.mean((y - mean) ** 2, axis=(0, 2, 3), keepdims=True)
    y = (y - mean) * lax.rsqrt(var + 1e-5)
    y = y * gamma.reshape(1, -1, 1, 1) + beta.reshape(1, -1, 1, 1)
    return jnp.maximum(y, 0.0)


if __name__ == "__main__":
    key = jax.random.PRNGKey(0)
    k_x, k_w = jax.random.split(key)

    N, Cin, H, W, Cout = 2, 4, 16, 16, 8

    x = jax.random.normal(k_x, (N, Cin, H, W), dtype=jnp.float32)

    # Deterministic init mirroring Backbone.init_weight:
    #   Conv2d: kaiming_normal_(mode='fan_out') -> std=sqrt(2/(Cout*kh*kw)), bias=0
    #   BatchNorm2d: weight = 1, bias = 0
    fan_out = Cout * 3 * 3
    w_hwio = (jax.random.normal(k_w, (3, 3, Cin, Cout), dtype=jnp.float32)
              * jnp.sqrt(2.0 / fan_out))
    gamma = jnp.ones((Cout,), dtype=jnp.float32)
    beta = jnp.zeros((Cout,), dtype=jnp.float32)

    # tile_m=128 so the toy shape (H*W = 256 pixels/image) exercises a 2x2 grid.
    fwd = jax.jit(partial(backbone_stem_forward, tile_m=128))
    out = fwd(x, w_hwio, gamma, beta)
    out = jax.block_until_ready(out)

    ref = _reference(x, w_hwio, gamma, beta)
    assert out.shape == (N, Cout, H, W)
    max_err = float(jnp.max(jnp.abs(out - ref)))
    # bf16 matmul operands -> looser tolerance than the f32 version.
    assert jnp.allclose(out, ref, atol=3e-2, rtol=3e-2), \
        f"mismatch vs JAX reference (max |err| = {max_err})"

    print("KERNEL_OK")
</pallas_src>

<mosaic_0001>
module attributes {stable_mosaic.version = 11 : i64} {
  func.func @_conv_stats_kernel(%arg0: i32, %arg1: i32, %arg2: memref<1x40x128xbf16, #tpu.memory_space<vmem>>, %arg3: memref<8x40xbf16, #tpu.memory_space<vmem>>, %arg4: memref<1x1x8x128xf32, #tpu.memory_space<vmem>>, %arg5: memref<1x1x8x128xf32, #tpu.memory_space<vmem>>) attributes {dimension_semantics = [#tpu.dimension_semantics<parallel>, #tpu.dimension_semantics<parallel>], iteration_bounds = array<i64: 2, 2>, scalar_prefetch = 0 : i64, scratch_operands = 0 : i64, tpu.core_type = #tpu.core_type<tc>, window_params = [{transform_indices = @transform_0, window_bounds = array<i64: 1, 40, 128>}, {pipeline_mode = #tpu.pipeline_mode<synchronous>, transform_indices = @transform_1, window_bounds = array<i64: 8, 40>}, {transform_indices = @transform_2, window_bounds = array<i64: 1, 1, 8, 128>}, {transform_indices = @transform_3, window_bounds = array<i64: 1, 1, 8, 128>}]} {
    %c0 = arith.constant 0 : index
    %c0_0 = arith.constant 0 : index
    %0 = vector.load %arg3[%c0, %c0_0] : memref<8x40xbf16, #tpu.memory_space<vmem>>, vector<8x40xbf16>
    %c0_1 = arith.constant 0 : index
    %c0_2 = arith.constant 0 : index
    %c0_3 = arith.constant 0 : index
    %1 = vector.load %arg2[%c0_1, %c0_2, %c0_3] : memref<1x40x128xbf16, #tpu.memory_space<vmem>>, vector<1x40x128xbf16>
    %2 = vector.shape_cast %1 : vector<1x40x128xbf16> to vector<40x128xbf16>
    %cst = arith.constant dense<0.000000e+00> : vector<8x128xf32>
    %3 = tpu.matmul %0, %2, %cst {dimension_numbers = #tpu.dot_dimension_numbers<[1], [0], [0], [1], [0, 0, 1, 1], [], []>} : vector<8x40xbf16>, vector<40x128xbf16>, vector<8x128xf32> -> vector<8x128xf32>
    %cst_4 = arith.constant dense<0.000000e+00> : vector<8xf32>
    %4 = vector.multi_reduction <add>, %3, %cst_4 [1] : vector<8x128xf32> to vector<8xf32>
    %5 = vector.shape_cast %4 : vector<8xf32> to vector<8x1xf32>
    %6 = arith.mulf %3, %3 : vector<8x128xf32>
    %cst_5 = arith.constant dense<0.000000e+00> : vector<8xf32>
    %7 = vector.multi_reduction <add>, %6, %cst_5 [1] : vector<8x128xf32> to vector<8xf32>
    %8 = vector.shape_cast %7 : vector<8xf32> to vector<8x1xf32>
    %9 = vector.shape_cast %5 : vector<8x1xf32> to vector<8x1xf32>
    %10 = vector.broadcast %9 : vector<8x1xf32> to vector<8x128xf32>
    %c0_6 = arith.constant 0 : index
    %c0_7 = arith.constant 0 : index
    %c0_8 = arith.constant 0 : index
    %c0_9 = arith.constant 0 : index
    %11 = vector.load %arg4[%c0_6, %c0_7, %c0_8, %c0_9] : memref<1x1x8x128xf32, #tpu.memory_space<vmem>>, vector<1x1x8x128xf32>
    %12 = vector.shape_cast %11 : vector<1x1x8x128xf32> to vector<8x128xf32>
    %13 = vector.shape_cast %10 : vector<8x128xf32> to vector<1x1x8x128xf32>
    tpu.vector_store %arg4[%c0_6, %c0_7, %c0_8, %c0_9], %13 {strides = array<i32>} : memref<1x1x8x128xf32, #tpu.memory_space<vmem>>, vector<1x1x8x128xf32>,
    %14 = vector.shape_cast %8 : vector<8x1xf32> to vector<8x1xf32>
    %15 = vector.broadcast %14 : vector<8x1xf32> to vector<8x128xf32>
    %c0_10 = arith.constant 0 : index
    %c0_11 = arith.constant 0 : index
    %c0_12 = arith.constant 0 : index
    %c0_13 = arith.constant 0 : index
    %16 = vector.load %arg5[%c0_10, %c0_11, %c0_12, %c0_13] : memref<1x1x8x128xf32, #tpu.memory_space<vmem>>, vector<1x1x8x128xf32>
    %17 = vector.shape_cast %16 : vector<1x1x8x128xf32> to vector<8x128xf32>
    %18 = vector.shape_cast %15 : vector<8x128xf32> to vector<1x1x8x128xf32>
    tpu.vector_store %arg5[%c0_10, %c0_11, %c0_12, %c0_13], %18 {strides = array<i32>} : memref<1x1x8x128xf32, #tpu.memory_space<vmem>>, vector<1x1x8x128xf32>,
    return
  }
  func.func @transform_0(%arg0: i32, %arg1: i32) -> (i32, i32, i32) {
    %c0_i32 = arith.constant 0 : i32
    %c0_i32_0 = arith.constant 0 : i32
    return %arg0, %c0_i32, %arg1 : i32, i32, i32
  }
  func.func @transform_1(%arg0: i32, %arg1: i32) -> (i32, i32) {
    %c0_i32 = arith.constant 0 : i32
    %c0_i32_0 = arith.constant 0 : i32
    %c0_i32_1 = arith.constant 0 : i32
    return %c0_i32, %c0_i32_0 : i32, i32
  }
  func.func @transform_2(%arg0: i32, %arg1: i32) -> (i32, i32, i32, i32) {
    %c0_i32 = arith.constant 0 : i32
    %c0_i32_0 = arith.constant 0 : i32
    %c0_i32_1 = arith.constant 0 : i32
    return %arg0, %arg1, %c0_i32, %c0_i32_0 : i32, i32, i32, i32
  }
  func.func @transform_3(%arg0: i32, %arg1: i32) -> (i32, i32, i32, i32) {
    %c0_i32 = arith.constant 0 : i32
    %c0_i32_0 = arith.constant 0 : i32
    %c0_i32_1 = arith.constant 0 : i32
    return %arg0, %arg1, %c0_i32, %c0_i32_0 : i32, i32, i32, i32
  }
}

module attributes {stable_mosaic.version = 11 : i64} {
  func.func @_conv_bn_relu_kernel(%arg0: i32, %arg1: i32, %arg2: memref<1x40x128xbf16, #tpu.memory_space<vmem>>, %arg3: memref<8x40xbf16, #tpu.memory_space<vmem>>, %arg4: memref<8x128xf32, #tpu.memory_space<vmem>>, %arg5: memref<8x128xf32, #tpu.memory_space<vmem>>, %arg6: memref<1x8x128xf32, #tpu.memory_space<vmem>>) attributes {dimension_semantics = [#tpu.dimension_semantics<parallel>, #tpu.dimension_semantics<parallel>], iteration_bounds = array<i64: 2, 2>, scalar_prefetch = 0 : i64, scratch_operands = 0 : i64, tpu.core_type = #tpu.core_type<tc>, window_params = [{transform_indices = @transform_0, window_bounds = array<i64: 1, 40, 128>}, {pipeline_mode = #tpu.pipeline_mode<synchronous>, transform_indices = @transform_1, window_bounds = array<i64: 8, 40>}, {pipeline_mode = #tpu.pipeline_mode<synchronous>, transform_indices = @transform_2, window_bounds = array<i64: 8, 128>}, {pipeline_mode = #tpu.pipeline_mode<synchronous>, transform_indices = @transform_3, window_bounds = array<i64: 8, 128>}, {transform_indices = @transform_4, window_bounds = array<i64: 1, 8, 128>}]} {
    %c0 = arith.constant 0 : index
    %c0_0 = arith.constant 0 : index
    %0 = vector.load %arg3[%c0, %c0_0] : memref<8x40xbf16, #tpu.memory_space<vmem>>, vector<8x40xbf16>
    %c0_1 = arith.constant 0 : index
    %c0_2 = arith.constant 0 : index
    %c0_3 = arith.constant 0 : index
    %1 = vector.load %arg2[%c0_1, %c0_2, %c0_3] : memref<1x40x128xbf16, #tpu.memory_space<vmem>>, vector<1x40x128xbf16>
    %2 = vector.shape_cast %1 : vector<1x40x128xbf16> to vector<40x128xbf16>
    %cst = arith.constant dense<0.000000e+00> : vector<8x128xf32>
    %3 = tpu.matmul %0, %2, %cst {dimension_numbers = #tpu.dot_dimension_numbers<[1], [0], [0], [1], [0, 0, 1, 1], [], []>} : vector<8x40xbf16>, vector<40x128xbf16>, vector<8x128xf32> -> vector<8x128xf32>
    %c0_4 = arith.constant 0 : index
    %c0_5 = arith.constant 0 : index
    %4 = vector.load %arg4[%c0_4, %c0_5] : memref<8x128xf32, #tpu.memory_space<vmem>>, vector<8x1xf32>
    %c0_6 = arith.constant 0 : index
    %c0_7 = arith.constant 0 : index
    %5 = vector.load %arg5[%c0_6, %c0_7] : memref<8x128xf32, #tpu.memory_space<vmem>>, vector<8x1xf32>
    %6 = vector.broadcast %4 : vector<8x1xf32> to vector<8x128xf32>
    %7 = arith.mulf %3, %6 : vector<8x128xf32>
    %8 = vector.broadcast %5 : vector<8x1xf32> to vector<8x128xf32>
    %9 = arith.addf %7, %8 : vector<8x128xf32>
    %cst_8 = arith.constant 0.000000e+00 : f32
    %10 = vector.broadcast %cst_8 : f32 to vector<8x128xf32>
    %11 = arith.maximumf %9, %10 : vector<8x128xf32>
    %c0_9 = arith.constant 0 : index
    %c0_10 = arith.constant 0 : index
    %c0_11 = arith.constant 0 : index
    %12 = vector.load %arg6[%c0_9, %c0_10, %c0_11] : memref<1x8x128xf32, #tpu.memory_space<vmem>>, vector<1x8x128xf32>
    %13 = vector.shape_cast %12 : vector<1x8x128xf32> to vector<8x128xf32>
    %14 = vector.shape_cast %11 : vector<8x128xf32> to vector<1x8x128xf32>
    tpu.vector_store %arg6[%c0_9, %c0_10, %c0_11], %14 {strides = array<i32>} : memref<1x8x128xf32, #tpu.memory_space<vmem>>, vector<1x8x128xf32>,
    return
  }
  func.func @transform_0(%arg0: i32, %arg1: i32) -> (i32, i32, i32) {
    %c0_i32 = arith.constant 0 : i32
    %c0_i32_0 = arith.constant 0 : i32
    return %arg0, %c0_i32, %arg1 : i32, i32, i32
  }
  func.func @transform_1(%arg0: i32, %arg1: i32) -> (i32, i32) {
    %c0_i32 = arith.constant 0 : i32
    %c0_i32_0 = arith.constant 0 : i32
    %c0_i32_1 = arith.constant 0 : i32
    return %c0_i32, %c0_i32_0 : i32, i32
  }
  func.func @transform_2(%arg0: i32, %arg1: i32) -> (i32, i32) {
    %c0_i32 = arith.constant 0 : i32
    %c0_i32_0 = arith.constant 0 : i32
    %c0_i32_1 = arith.constant 0 : i32
    return %c0_i32, %c0_i32_0 : i32, i32
  }
  func.func @transform_3(%arg0: i32, %arg1: i32) -> (i32, i32) {
    %c0_i32 = arith.constant 0 : i32
    %c0_i32_0 = arith.constant 0 : i32
    %c0_i32_1 = arith.constant 0 : i32
    return %c0_i32, %c0_i32_0 : i32, i32
  }
  func.func @transform_4(%arg0: i32, %arg1: i32) -> (i32, i32, i32) {
    %c0_i32 = arith.constant 0 : i32
    %c0_i32_0 = arith.constant 0 : i32
    return %arg0, %c0_i32, %arg1 : i32, i32, i32
  }
}

</mosaic_0001>

<llo_original>
// kernel: backbone_stem_forward.3
$region0: #{backbone_stem_forward.3}
  #allocation0 [shape = 'u32[]', space=smem, size = 0x4, offset = 0x4, fixed_abs, tag = 'smem constant byte address 0x4 - core index']
  #allocation1 [shape = 'u32[144,128]{1,0:T(1,128)}', space=vmem, size = 0x12000, scoped, tag = 'internal scratch']
  %s0 = inlined_call_operand.vmem [shape: bf16[2,40,256], index: 0, kind: input, shape index: {}]
  %s1 = inlined_call_operand.vmem [shape: bf16[8,40], index: 1, kind: input, shape index: {}]
  %s2 = inlined_call_operand.vmem [shape: f32[8,128], index: 2, kind: input, shape index: {}]
  %s3 = inlined_call_operand.vmem [shape: f32[8,128], index: 3, kind: input, shape index: {}]
  %s4 = inlined_call_operand.vmem [shape: f32[2,8,256], index: 4, kind: output, shape index: {}]
  %s5 = sld [smem:[#allocation0]]
  $region90: #{backbone_stem_forward.3} parent=0
    _
  %s7 = ssub.s32 1, %s5
  %s8 = scalar_select 0, %s7, %s5
  $region1: #{backbone_stem_forward.3} parent=0
    #allocation2 [shape = 'u8[20480]{0}', space=vmem, size = 0x5000, scoped, tag = 'input window, operand 0']
    loop: start=0, step=1, limit=6
    $region2: #{backbone_stem_forward.3} parent=1 // loop_pre_header
      _
    $region3: #{backbone_stem_forward.3} parent=1 // loop_header
      %s10 = sphi 0, %s14
      %p11 = scmp.ge.s32.totalorder %s10, 6
      %s17 = sphi 0, %s29
      %s18 = sphi 0, %s25
      %s19 = sphi 0, %s17
      %s20 = sphi 0, %s18
      %s21 = sphi 0, %s19
      %s22 = sphi 0, %s20
      %s34 = sphi 0, %s36
      %s37 = sphi 0, %s34
      %s38 = sphi 0, %s37
      %s54 = sphi 0, %s38
      %s58 = sphi 0, %s58
      %s60 = sphi 0, %s58
      %s61 = sphi 0, %s60
      %s75 = sphi 0, %s61
      %s79 = sphi 0, %s79
      %s81 = sphi 0, %s79
      %s82 = sphi 0, %s81
      %s96 = sphi 0, %s82
      %s100 = sphi 0, %s100
      %s102 = sphi 0, %s100
      %s103 = sphi 0, %s102
      %s117 = sphi 0, %s103
      %s125 = sphi 0, %s127
      %s128 = sphi 0, %s125
      %s129 = sphi 0, %s128
      %s145 = sphi 0, %s129
    $region4: #{backbone_stem_forward.3} parent=1 // loop_header_branch
      %13 = sbr.rel (%p11) target = $region8
    $region5: #{backbone_stem_forward.3} parent=1 // loop_body
      %s15 = ssub.s32 %s10, 1
      %s16 = ssub.s32 %s10, 2
      %s23 = sadd.s32 1, %s18
      %p24 = scmp.ge.s32.totalorder %s23, 2
      %s25 = scalar_select %p24, 0, %s23
      %s26 = sadd.s32 1, %s17
      %s27 = scalar_select %p24, %s26, %s17
      %p28 = scmp.ge.s32.totalorder %s27, 2
      %s29 = scalar_select %p28, 0, %s27
      %s30 = ssub.s32 %s17, %s29
      %s31 = ssub.s32 %s18, %s25
      %s32 = sor.u32 %s30, %s31
      %p33 = scmp.eq.s32.totalorder %s32, 0
      %s35 = sadd.s32 %s34, 1
      %s36 = scalar_select %p33, %s34, %s35
      %p39 = pneg %p33
      %p40 = scmp.eq.s32.totalorder %s10, 3
      %p41 = por %p39, %p40
      %p42 = scmp.ne.s32.totalorder %s34, %s37
      %p43 = scmp.eq.s32.totalorder %s10, 0
      %p44 = por %p42, %p43
      %p45 = scmp.ne.s32.totalorder %s34, %s37
      %p46 = scmp.eq.s32.totalorder %s15, 3
      %p47 = por %p45, %p46
      %p48 = scmp.ne.s32.totalorder %s37, %s38
      %p49 = scmp.eq.s32.totalorder %s15, 0
      %p50 = por %p48, %p49
      %p51 = scmp.ne.s32.totalorder %s37, %s38
      %p52 = scmp.eq.s32.totalorder %s16, 3
      %p53 = por %p51, %p52
      %p55 = scmp.ne.s32.totalorder %s38, %s54
      %p56 = scmp.eq.s32.totalorder %s16, 0
      %p57 = por %p55, %p56
      %s59 = sadd.s32 %s58, 1
      %p62 = scmp.eq.s32.totalorder %s10, 3
      %p63 = scmp.ne.s32.totalorder %s58, %s60
      %p64 = scmp.eq.s32.totalorder %s10, 0
      %p65 = por %p63, %p64
      %p66 = scmp.ne.s32.totalorder %s58, %s60
      %p67 = scmp.eq.s32.totalorder %s15, 3
      %p68 = por %p66, %p67
      %p69 = scmp.ne.s32.totalorder %s60, %s61
      %p70 = scmp.eq.s32.totalorder %s15, 0
      %p71 = por %p69, %p70
      %p72 = scmp.ne.s32.totalorder %s60, %s61
      %p73 = scmp.eq.s32.totalorder %s16, 3
      %p74 = por %p72, %p73
      %p76 = scmp.ne.s32.totalorder %s61, %s75
      %p77 = scmp.eq.s32.totalorder %s16, 0
      %p78 = por %p76, %p77
      %s80 = sadd.s32 %s79, 1
      %p83 = scmp.eq.s32.totalorder %s10, 3
      %p84 = scmp.ne.s32.totalorder %s79, %s81
      %p85 = scmp.eq.s32.totalorder %s10, 0
      %p86 = por %p84, %p85
      %p87 = scmp.ne.s32.totalorder %s79, %s81
      %p88 = scmp.eq.s32.totalorder %s15, 3
      %p89 = por %p87, %p88
      %p90 = scmp.ne.s32.totalorder %s81, %s82
      %p91 = scmp.eq.s32.totalorder %s15, 0
      %p92 = por %p90, %p91
      %p93 = scmp.ne.s32.totalorder %s81, %s82
      %p94 = scmp.eq.s32.totalorder %s16, 3
      %p95 = por %p93, %p94
      %p97 = scmp.ne.s32.totalorder %s82, %s96
      %p98 = scmp.eq.s32.totalorder %s16, 0
      %p99 = por %p97, %p98
      %s101 = sadd.s32 %s100, 1
      %p104 = scmp.eq.s32.totalorder %s10, 3
      %p105 = scmp.ne.s32.totalorder %s100, %s102
      %p106 = scmp.eq.s32.totalorder %s10, 0
      %p107 = por %p105, %p106
      %p108 = scmp.ne.s32.totalorder %s100, %s102
      %p109 = scmp.eq.s32.totalorder %s15, 3
      %p110 = por %p108, %p109
      %p111 = scmp.ne.s32.totalorder %s102, %s103
      %p112 = scmp.eq.s32.totalorder %s15, 0
      %p113 = por %p111, %p112
      %p114 = scmp.ne.s32.totalorder %s102, %s103
      %p115 = scmp.eq.s32.totalorder %s16, 3
      %p116 = por %p114, %p115
      %p118 = scmp.ne.s32.totalorder %s103, %s117
      %p119 = scmp.eq.s32.totalorder %s16, 0
      %p120 = por %p118, %p119
      %s121 = ssub.s32 %s17, %s29
      %s122 = ssub.s32 %s18, %s25
      %s123 = sor.u32 %s121, %s122
      %p124 = scmp.eq.s32.totalorder %s123, 0
      %s126 = sadd.s32 %s125, 1
      %s127 = scalar_select %p124, %s125, %s126
      %p130 = pneg %p124
      %p131 = scmp.eq.s32.totalorder %s10, 3
      %p132 = por %p130, %p131
      %p133 = scmp.ne.s32.totalorder %s125, %s128
      %p134 = scmp.eq.s32.totalorder %s10, 0
      %p135 = por %p133, %p134
      %p136 = scmp.ne.s32.totalorder %s125, %s128
      %p137 = scmp.eq.s32.totalorder %s15, 3
      %p138 = por %p136, %p137
      %p139 = scmp.ne.s32.totalorder %s128, %s129
      %p140 = scmp.eq.s32.totalorder %s15, 0
      %p141 = por %p139, %p140
      %p142 = scmp.ne.s32.totalorder %s128, %s129
      %p143 = scmp.eq.s32.totalorder %s16, 3
      %p144 = por %p142, %p143
      %p146 = scmp.ne.s32.totalorder %s129, %s145
      %p147 = scmp.eq.s32.totalorder %s16, 0
      %p148 = por %p146, %p147
      %p149 = scmp.le.s32.totalorder 1, %s10
      %p150 = scmp.lt.s32.totalorder %s10, 5
      %p151 = pnand %p149, %p150
      %p152 = pneg %p151
      // Predicated region
      $region9: #{backbone_stem_forward.3} parent=5 // pred_check
        _
      $region10: #{backbone_stem_forward.3} parent=5 // pred_check_branch
        %154 = sbr.rel (%p151) target = $region12
      $region11: #{backbone_stem_forward.3} parent=5 // pred_region
        %s155 = ssub.s32 %s10, 1
        // Predicated region
        $region13: #{backbone_stem_forward.3} parent=11 // pred_check
          %p156 = pneg %p71
        $region14: #{backbone_stem_forward.3} parent=11 // pred_check_branch
          %158 = sbr.rel (%p156) target = $region16
        $region15: #{backbone_stem_forward.3} parent=11 // pred_region
          _
        $region16: #{backbone_stem_forward.3} parent=11 // pred_fallthru
          _
        // Predicated region
        $region17: #{backbone_stem_forward.3} parent=11 // pred_check
          %p159 = pneg %p92
        $region18: #{backbone_stem_forward.3} parent=11 // pred_check_branch
          %161 = sbr.rel (%p159) target = $region20
        $region19: #{backbone_stem_forward.3} parent=11 // pred_region
          _
        $region20: #{backbone_stem_forward.3} parent=11 // pred_fallthru
          _
        // Predicated region
        $region21: #{backbone_stem_forward.3} parent=11 // pred_check
          %p162 = pneg %p113
        $region22: #{backbone_stem_forward.3} parent=11 // pred_check_branch
          %164 = sbr.rel (%p162) target = $region24
        $region23: #{backbone_stem_forward.3} parent=11 // pred_region
          _
        $region24: #{backbone_stem_forward.3} parent=11 // pred_fallthru
          _
      $region12: #{backbone_stem_forward.3} parent=5 // pred_fallthru
        _
      %p165 = scmp.lt.s32.totalorder %s10, 4
      // Predicated region
      $region25: #{backbone_stem_forward.3} parent=5 // pred_check
        %p166 = pneg %p165
      $region26: #{backbone_stem_forward.3} parent=5 // pred_check_branch
        %168 = sbr.rel (%p166) target = $region28
      $region27: #{backbone_stem_forward.3} parent=5 // pred_region
        // Predicated region
        $region29: #{backbone_stem_forward.3} parent=27 // pred_check
          %p169 = pneg %p44
        $region30: #{backbone_stem_forward.3} parent=27 // pred_check_branch
          %171 = sbr.rel (%p169) target = $region32
        $region31: #{backbone_stem_forward.3} parent=27 // pred_region
          %s172 = sand.u32 %s34, 1
          %s173 = sand.u32 %s34, 1
          %s174 = smul.addr %s173, 20
          %s175 = scalar_lea.vmem [#allocation2], %s174
          %s176 = smul.addr %s17, 10
          %s177 = sadd.s32 %s18, %s176
          %s178 = smul.addr %s177, 4
          %s179 = scalar_lea.vmem %s0, %s178
          // Predicated region
          $region33: #{backbone_stem_forward.3} parent=31 // pred_check
            _
          $region34: #{backbone_stem_forward.3} parent=31 // pred_check_branch
            %181 = sbr.rel (0) target = $region36
          $region35: #{backbone_stem_forward.3} parent=31 // pred_region
            // Predicated region
            $region37: #{backbone_stem_forward.3} parent=35 // pred_check
              _
            $region38: #{backbone_stem_forward.3} parent=35 // pred_check_branch
              %183 = sbr.rel target = $region40
            $region39: #{backbone_stem_forward.3} parent=35 // pred_region
              // Predicated region
              $region52: #{backbone_stem_forward.3} parent=39 // pred_check
                _
              $region53: #{backbone_stem_forward.3} parent=39 // pred_check_branch
                %206 = sbr.rel (0) target = $region55
              $region54: #{backbone_stem_forward.3} parent=39 // pred_region
                loop: start=0, step=1, limit=1
                $region56: #{backbone_stem_forward.3} parent=54 // loop_pre_header
                  _
                $region57: #{backbone_stem_forward.3} parent=54 // loop_header
                  %s208 = sphi 0, %s212
                  %p209 = scmp.ge.s32.totalorder %s208, 1
                  %s213 = sphi %s179, %s179
                  %s214 = sphi %s175, %s175
                $region58: #{backbone_stem_forward.3} parent=54 // loop_header_branch
                  %211 = sbr.rel (%p209) target = $region62
                $region59: #{backbone_stem_forward.3} parent=54 // loop_body
                  _
                $region60: #{backbone_stem_forward.3} parent=54 // loop_footer
                  %s212 = sadd.s32 1, %s208
                $region61: #{backbone_stem_forward.3} parent=54 // loop_footer_branch
                  %207 = sbr.rel target = $region57
                $region62: #{backbone_stem_forward.3} parent=54 // loop_exit
                  _
                loop: start=0, step=1, limit=1
                $region63: #{backbone_stem_forward.3} parent=54 // loop_pre_header
                  _
                $region64: #{backbone_stem_forward.3} parent=54 // loop_header
                  %s217 = sphi 0, %s221
                  %p218 = scmp.ge.s32.totalorder %s217, 1
                  %s222 = sphi %s179, %s179
                  %s223 = sphi %s175, %s175
                $region65: #{backbone_stem_forward.3} parent=54 // loop_header_branch
                  %220 = sbr.rel (%p218) target = $region69
                $region66: #{backbone_stem_forward.3} parent=54 // loop_body
                  %v224 = vld [vmem:[%s222] sm:$0xf]
                  %225 = vst [vmem:[%s223] sm:$0xf] %v224
                  %v226 = vld [vmem:[%s222 + $0x8] sm:$0xf]
                  %227 = vst [vmem:[%s223 + $0x4] sm:$0xf] %v226
                  %v228 = vld [vmem:[%s222 + $0x10] sm:$0xf]
                  %229 = vst [vmem:[%s223 + $0x8] sm:$0xf] %v228
                  %v230 = vld [vmem:[%s222 + $0x18] sm:$0xf]
                  %231 = vst [vmem:[%s223 + $0xc] sm:$0xf] %v230
                  %v232 = vld [vmem:[%s222 + $0x20] sm:$0xf]
                  %233 = vst [vmem:[%s223 + $0x10] sm:$0xf] %v232
                $region67: #{backbone_stem_forward.3} parent=54 // loop_footer
                  %s221 = sadd.s32 1, %s217
                $region68: #{backbone_stem_forward.3} parent=54 // loop_footer_branch
                  %216 = sbr.rel target = $region64
                $region69: #{backbone_stem_forward.3} parent=54 // loop_exit
                  _
              $region55: #{backbone_stem_forward.3} parent=39 // pred_fallthru
                _
            $region40: #{backbone_stem_forward.3} parent=35 // pred_fallthru
              _
            // Predicated region
            $region41: #{backbone_stem_forward.3} parent=35 // pred_check
              _
            $region42: #{backbone_stem_forward.3} parent=35 // pred_check_branch
              %185 = sbr.rel (0) target = $region44
            $region43: #{backbone_stem_forward.3} parent=35 // pred_region
              loop: start=0, step=1, limit=1
              $region45: #{backbone_stem_forward.3} parent=43 // loop_pre_header
                _
              $region46: #{backbone_stem_forward.3} parent=43 // loop_header
                %s188 = sphi 0, %s192
                %p189 = scmp.ge.s32.totalorder %s188, 1
                %s193 = sphi %s179, %s179
                %s194 = sphi %s175, %s175
              $region47: #{backbone_stem_forward.3} parent=43 // loop_header_branch
                %191 = sbr.rel (%p189) target = $region51
              $region48: #{backbone_stem_forward.3} parent=43 // loop_body
                %v195 = vld [vmem:[%s193] sm:$0xf]
                %196 = vst [vmem:[%s194] sm:$0xf] %v195
                %v197 = vld [vmem:[%s193 + $0x8] sm:$0xf]
                %198 = vst [vmem:[%s194 + $0x4] sm:$0xf] %v197
                %v199 = vld [vmem:[%s193 + $0x10] sm:$0xf]
                %200 = vst [vmem:[%s194 + $0x8] sm:$0xf] %v199
                %v201 = vld [vmem:[%s193 + $0x18] sm:$0xf]
                %202 = vst [vmem:[%s194 + $0xc] sm:$0xf] %v201
                %v203 = vld [vmem:[%s193 + $0x20] sm:$0xf]
                %204 = vst [vmem:[%s194 + $0x10] sm:$0xf] %v203
              $region49: #{backbone_stem_forward.3} parent=43 // loop_footer
                %s192 = sadd.s32 1, %s188
              $region50: #{backbone_stem_forward.3} parent=43 // loop_footer_branch
                %187 = sbr.rel target = $region46
              $region51: #{backbone_stem_forward.3} parent=43 // loop_exit
                _
            $region44: #{backbone_stem_forward.3} parent=35 // pred_fallthru
              _
          $region36: #{backbone_stem_forward.3} parent=31 // pred_fallthru
            _
          %234 = vnop
        $region32: #{backbone_stem_forward.3} parent=27 // pred_fallthru
          _
      $region28: #{backbone_stem_forward.3} parent=5 // pred_fallthru
        _
      %p235 = scmp.le.s32.totalorder 1, %s10
      %p236 = scmp.lt.s32.totalorder %s10, 5
      %p237 = pnand %p235, %p236
      %p238 = pneg %p237
      // Predicated region
      $region70: #{backbone_stem_forward.3} parent=5 // pred_check
        _
      $region71: #{backbone_stem_forward.3} parent=5 // pred_check_branch
        %240 = sbr.rel (%p237) target = $region73
      $region72: #{backbone_stem_forward.3} parent=5 // pred_region
        %s241 = ssub.s32 %s10, 1
        %s242 = sand.u32 %s37, 1
        %s243 = sand.u32 %s37, 1
        %s244 = smul.addr %s243, 20
        %s245 = scalar_lea.vmem [#allocation2], %s244
        // Predicated region
        $region74: #{backbone_stem_forward.3} parent=72 // pred_check
          %p246 = pneg %p50
        $region75: #{backbone_stem_forward.3} parent=72 // pred_check_branch
          %248 = sbr.rel (%p246) target = $region77
        $region76: #{backbone_stem_forward.3} parent=72 // pred_region
          _
        $region77: #{backbone_stem_forward.3} parent=72 // pred_fallthru
          _
        %s249 = sand.u32 %s37, 1
        %s250 = sand.u32 %s37, 1
        %s251 = smul.addr %s250, 20
        %s252 = scalar_lea.vmem [#allocation2], %s251
        %p253 = pneg %p50
        %p254 = pneg %p47
        %p255 = pneg %p71
        %p256 = pneg %p68
        %p257 = pneg %p92
        %p258 = pneg %p89
        %p259 = pneg %p113
        %p260 = pneg %p110
        %p261 = pneg %p141
        %p262 = pneg %p138
        %p263 = scmp.lt.s32.totalorder %s19, 1
        %s264 = scalar_select %p263, %s19, 1
        %p265 = scmp.lt.s32.totalorder %s20, 1
        %s266 = scalar_select %p265, %s20, 1
        %s267 = smul.addr %s264, 2
        %s268 = sadd.s32 %s266, %s267
        %s269 = smul.addr %s268, 8
        %s270 = scalar_lea.vmem %s4, %s269
        %p271 = scmp.lt.s32.totalorder %s19, 1
        %s272 = scalar_select %p271, %s19, 1
        %p273 = scmp.lt.s32.totalorder %s20, 1
        %s274 = scalar_select %p273, %s20, 1
        %s275 = smul.addr %s272, 2
        %s276 = sadd.s32 %s274, %s275
        %s277 = smul.addr %s276, 8
        %s278 = scalar_lea.vmem %s4, %s277
        %v280 = vld [vmem:[%s1] sm:$0xf]
        %v281 = vld [vmem:[%s245] sm:$0xf]
        %v282 = vld [vmem:[%s245 + $0x4] sm:$0xf]
        %v283 = vld [vmem:[%s245 + $0x8] sm:$0xf]
        %v284 = vld [vmem:[%s245 + $0xc] sm:$0xf]
        %v285 = vld [vmem:[%s245 + $0x10] sm:$0xf]
        %v291 = vunpack.c.l.b16 %v281
        %v292 = vunpack.c.l.b16 %v282
        %v293 = vunpack.c.l.b16 %v283
        %v294 = vunpack.c.l.b16 %v284
        %v295 = vunpack.c.l.b16 %v285
        %v296 = vpack.c.b16 %v292, %v291
        %v297 = vpack.c.b16 %v294, %v293
        %v298 = vpack.c.b16 %v295, %v295
        %vm301 = vcmask 326656
        %v303 = vsel %vm301, %v280, 0
        %vm305 = vcmask 1043456
        %v307 = vsel %vm305, %v298, 0
        %309 = vmatprep.subr.bf16.mxu0 0
        %310 = vmatpush1.bf16.msra.mxu0 %v296
        %311 = vmatprep.subr.bf16.mxu0 0
        %312 = vmatpush1.bf16.msra.mxu0 %v297
        %313 = vmatprep.subr.bf16.mxu0 0
        %314 = vmatpush1.bf16.msra.mxu0 %v307
        %315 = vmatprep.subr.bf16.mxu0 0
        %316 = vmatpush1.bf16.msra.mxu0 0
        %317 = vmatprep.subr.bf16.mxu0 0
        %318 = vmatpush1.bf16.msra.mxu0 0
        %319 = vmatprep.subr.bf16.mxu0 0
        %320 = vmatpush1.bf16.msra.mxu0 0
        %321 = vmatprep.subr.bf16.mxu0 0
        %322 = vmatpush1.bf16.msra.mxu0 0
        %323 = vmatprep.subr.bf16.mxu0 0
        %324 = vmatpush1.bf16.msra.mxu0 0
        %325 = vmatprep.subr.bf16.mxu0 0
        %326 = vmatpush1.bf16.msra.mxu0 0
        %327 = vmatprep.subr.bf16.mxu0 0
        %328 = vmatpush1.bf16.msra.mxu0 0
        %329 = vmatprep.subr.bf16.mxu0 0
        %330 = vmatpush1.bf16.msra.mxu0 0
        %331 = vmatprep.subr.bf16.mxu0 0
        %332 = vmatpush1.bf16.msra.mxu0 0
        %333 = vmatprep.subr.bf16.mxu0 0
        %334 = vmatpush1.bf16.msra.mxu0 0
        %335 = vmatprep.subr.bf16.mxu0 0
        %336 = vmatpush1.bf16.msra.mxu0 0
        %337 = vmatprep.subr.bf16.mxu0 0
        %338 = vmatpush1.bf16.msra.mxu0 0
        %339 = vmatprep.subr.bf16.mxu0 0
        %340 = vmatpush1.bf16.msra.mxu0 0
        %341 = vmatprep.mubr.bf16.mxu0 0
        %342 = vmatmul.mubr.bf16.gmra.mrb[0].mxu0 %v303
        %v343 = vpop.f32.mrb[0].mxu0
        %v344 = vadd.f32 0.0, %v343
        %v345 = vpop.f32.mrb[0].mxu0
        %v346 = vpop.f32.mrb[0].mxu0
        %v347 = vpop.f32.mrb[0].mxu0
        %348 = vdwg.mxu0
        %v349 = vld [vmem:[%s2] sm:$0xff]
        %v350 = vld [vmem:[%s3] sm:$0xff]
        %352 = vset.pattern.permute.xlu0 0
        %353 = vperm.xlu0 %352, %v349
        %v354 = vpop.permute.xlu0 %353
        %v356 = vmul.f32 %v344, %v354
        %358 = vset.pattern.permute.xlu0 0
        %359 = vperm.xlu0 %358, %v350
        %v360 = vpop.permute.xlu0 %359
        %v362 = vadd.f32 %v356, %v360
        %v363 = vmax.f32 %v362, 0.0
        %364 = vst [vmem:[%s278] sm:$0xff] %v363
        %p365 = scmp.lt.s32.totalorder %s19, 1
        %s366 = scalar_select %p365, %s19, 1
        %p367 = scmp.lt.s32.totalorder %s20, 1
        %s368 = scalar_select %p367, %s20, 1
        %s369 = smul.addr %s366, 2
        %s370 = sadd.s32 %s368, %s369
        %s371 = smul.addr %s370, 8
        %s372 = scalar_lea.vmem %s4, %s371
        // Predicated region
        $region78: #{backbone_stem_forward.3} parent=72 // pred_check
          %p373 = pneg %p138
        $region79: #{backbone_stem_forward.3} parent=72 // pred_check_branch
          %375 = sbr.rel (%p373) target = $region81
        $region80: #{backbone_stem_forward.3} parent=72 // pred_region
          _
        $region81: #{backbone_stem_forward.3} parent=72 // pred_fallthru
          _
      $region73: #{backbone_stem_forward.3} parent=5 // pred_fallthru
        _
      %p376 = scmp.le.s32.totalorder 2, %s10
      // Predicated region
      $region82: #{backbone_stem_forward.3} parent=5 // pred_check
        %p377 = pneg %p376
      $region83: #{backbone_stem_forward.3} parent=5 // pred_check_branch
        %379 = sbr.rel (%p377) target = $region85
      $region84: #{backbone_stem_forward.3} parent=5 // pred_region
        %s380 = ssub.s32 %s10, 2
        // Predicated region
        $region86: #{backbone_stem_forward.3} parent=84 // pred_check
          %p381 = pneg %p144
        $region87: #{backbone_stem_forward.3} parent=84 // pred_check_branch
          %383 = sbr.rel (%p381) target = $region89
        $region88: #{backbone_stem_forward.3} parent=84 // pred_region
          %p384 = scmp.lt.s32.totalorder %s21, 1
          %s385 = scalar_select %p384, %s21, 1
          %p386 = scmp.lt.s32.totalorder %s22, 1
          %s387 = scalar_select %p386, %s22, 1
          %s388 = smul.addr %s385, 2
          %s389 = sadd.s32 %s387, %s388
          %s390 = smul.addr %s389, 8
          %s391 = scalar_lea.vmem %s4, %s390
        $region89: #{backbone_stem_forward.3} parent=84 // pred_fallthru
          _
      $region85: #{backbone_stem_forward.3} parent=5 // pred_fallthru
        _
    $region6: #{backbone_stem_forward.3} parent=1 // loop_footer
      %s14 = sadd.s32 1, %s10
    $region7: #{backbone_stem_forward.3} parent=1 // loop_footer_branch
      %9 = sbr.rel target = $region3
    $region8: #{backbone_stem_forward.3} parent=1 // loop_exit
      _

// kernel: backbone_stem_forward.2
$region0: #{backbone_stem_forward.2}
  #allocation0 [shape = 'u32[]', space=smem, size = 0x4, offset = 0x4, fixed_abs, tag = 'smem constant byte address 0x4 - core index']
  #allocation1 [shape = 'u32[144,128]{1,0:T(1,128)}', space=vmem, size = 0x12000, scoped, tag = 'internal scratch']
  %s0 = inlined_call_operand.vmem [shape: bf16[2,40,256], index: 0, kind: input, shape index: {}]
  %s1 = inlined_call_operand.vmem [shape: bf16[8,40], index: 1, kind: input, shape index: {}]
  %s2 = inlined_call_operand.vmem [shape: f32[2,2,8,128], index: 2, kind: output, shape index: {0}]
  %s3 = inlined_call_operand.vmem [shape: f32[2,2,8,128], index: 3, kind: output, shape index: {1}]
  %4 = xla_tuple %s2, %s3
  %s5 = sld [smem:[#allocation0]]
  $region90: #{backbone_stem_forward.2} parent=0
    _
  %s7 = ssub.s32 1, %s5
  %s8 = scalar_select 0, %s7, %s5
  $region1: #{backbone_stem_forward.2} parent=0
    #allocation2 [shape = 'u8[20480]{0}', space=vmem, size = 0x5000, scoped, tag = 'input window, operand 0']
    loop: start=0, step=1, limit=6
    $region2: #{backbone_stem_forward.2} parent=1 // loop_pre_header
      _
    $region3: #{backbone_stem_forward.2} parent=1 // loop_header
      %s10 = sphi 0, %s14
      %p11 = scmp.ge.s32.totalorder %s10, 6
      %s17 = sphi 0, %s29
      %s18 = sphi 0, %s25
      %s19 = sphi 0, %s17
      %s20 = sphi 0, %s18
      %s21 = sphi 0, %s19
      %s22 = sphi 0, %s20
      %s34 = sphi 0, %s36
      %s37 = sphi 0, %s34
      %s38 = sphi 0, %s37
      %s54 = sphi 0, %s38
      %s58 = sphi 0, %s58
      %s60 = sphi 0, %s58
      %s61 = sphi 0, %s60
      %s75 = sphi 0, %s61
      %s83 = sphi 0, %s85
      %s86 = sphi 0, %s83
      %s87 = sphi 0, %s86
      %s103 = sphi 0, %s87
      %s111 = sphi 0, %s113
      %s114 = sphi 0, %s111
      %s115 = sphi 0, %s114
      %s131 = sphi 0, %s115
    $region4: #{backbone_stem_forward.2} parent=1 // loop_header_branch
      %13 = sbr.rel (%p11) target = $region8
    $region5: #{backbone_stem_forward.2} parent=1 // loop_body
      %s15 = ssub.s32 %s10, 1
      %s16 = ssub.s32 %s10, 2
      %s23 = sadd.s32 1, %s18
      %p24 = scmp.ge.s32.totalorder %s23, 2
      %s25 = scalar_select %p24, 0, %s23
      %s26 = sadd.s32 1, %s17
      %s27 = scalar_select %p24, %s26, %s17
      %p28 = scmp.ge.s32.totalorder %s27, 2
      %s29 = scalar_select %p28, 0, %s27
      %s30 = ssub.s32 %s17, %s29
      %s31 = ssub.s32 %s18, %s25
      %s32 = sor.u32 %s30, %s31
      %p33 = scmp.eq.s32.totalorder %s32, 0
      %s35 = sadd.s32 %s34, 1
      %s36 = scalar_select %p33, %s34, %s35
      %p39 = pneg %p33
      %p40 = scmp.eq.s32.totalorder %s10, 3
      %p41 = por %p39, %p40
      %p42 = scmp.ne.s32.totalorder %s34, %s37
      %p43 = scmp.eq.s32.totalorder %s10, 0
      %p44 = por %p42, %p43
      %p45 = scmp.ne.s32.totalorder %s34, %s37
      %p46 = scmp.eq.s32.totalorder %s15, 3
      %p47 = por %p45, %p46
      %p48 = scmp.ne.s32.totalorder %s37, %s38
      %p49 = scmp.eq.s32.totalorder %s15, 0
      %p50 = por %p48, %p49
      %p51 = scmp.ne.s32.totalorder %s37, %s38
      %p52 = scmp.eq.s32.totalorder %s16, 3
      %p53 = por %p51, %p52
      %p55 = scmp.ne.s32.totalorder %s38, %s54
      %p56 = scmp.eq.s32.totalorder %s16, 0
      %p57 = por %p55, %p56
      %s59 = sadd.s32 %s58, 1
      %p62 = scmp.eq.s32.totalorder %s10, 3
      %p63 = scmp.ne.s32.totalorder %s58, %s60
      %p64 = scmp.eq.s32.totalorder %s10, 0
      %p65 = por %p63, %p64
      %p66 = scmp.ne.s32.totalorder %s58, %s60
      %p67 = scmp.eq.s32.totalorder %s15, 3
      %p68 = por %p66, %p67
      %p69 = scmp.ne.s32.totalorder %s60, %s61
      %p70 = scmp.eq.s32.totalorder %s15, 0
      %p71 = por %p69, %p70
      %p72 = scmp.ne.s32.totalorder %s60, %s61
      %p73 = scmp.eq.s32.totalorder %s16, 3
      %p74 = por %p72, %p73
      %p76 = scmp.ne.s32.totalorder %s61, %s75
      %p77 = scmp.eq.s32.totalorder %s16, 0
      %p78 = por %p76, %p77
      %s79 = ssub.s32 %s17, %s29
      %s80 = ssub.s32 %s18, %s25
      %s81 = sor.u32 %s79, %s80
      %p82 = scmp.eq.s32.totalorder %s81, 0
      %s84 = sadd.s32 %s83, 1
      %s85 = scalar_select %p82, %s83, %s84
      %p88 = pneg %p82
      %p89 = scmp.eq.s32.totalorder %s10, 3
      %p90 = por %p88, %p89
      %p91 = scmp.ne.s32.totalorder %s83, %s86
      %p92 = scmp.eq.s32.totalorder %s10, 0
      %p93 = por %p91, %p92
      %p94 = scmp.ne.s32.totalorder %s83, %s86
      %p95 = scmp.eq.s32.totalorder %s15, 3
      %p96 = por %p94, %p95
      %p97 = scmp.ne.s32.totalorder %s86, %s87
      %p98 = scmp.eq.s32.totalorder %s15, 0
      %p99 = por %p97, %p98
      %p100 = scmp.ne.s32.totalorder %s86, %s87
      %p101 = scmp.eq.s32.totalorder %s16, 3
      %p102 = por %p100, %p101
      %p104 = scmp.ne.s32.totalorder %s87, %s103
      %p105 = scmp.eq.s32.totalorder %s16, 0
      %p106 = por %p104, %p105
      %s107 = ssub.s32 %s17, %s29
      %s108 = ssub.s32 %s18, %s25
      %s109 = sor.u32 %s107, %s108
      %p110 = scmp.eq.s32.totalorder %s109, 0
      %s112 = sadd.s32 %s111, 1
      %s113 = scalar_select %p110, %s111, %s112
      %p116 = pneg %p110
      %p117 = scmp.eq.s32.totalorder %s10, 3
      %p118 = por %p116, %p117
      %p119 = scmp.ne.s32.totalorder %s111, %s114
      %p120 = scmp.eq.s32.totalorder %s10, 0
      %p121 = por %p119, %p120
      %p122 = scmp.ne.s32.totalorder %s111, %s114
      %p123 = scmp.eq.s32.totalorder %s15, 3
      %p124 = por %p122, %p123
      %p125 = scmp.ne.s32.totalorder %s114, %s115
      %p126 = scmp.eq.s32.totalorder %s15, 0
      %p127 = por %p125, %p126
      %p128 = scmp.ne.s32.totalorder %s114, %s115
      %p129 = scmp.eq.s32.totalorder %s16, 3
      %p130 = por %p128, %p129
      %p132 = scmp.ne.s32.totalorder %s115, %s131
      %p133 = scmp.eq.s32.totalorder %s16, 0
      %p134 = por %p132, %p133
      %p135 = scmp.le.s32.totalorder 1, %s10
      %p136 = scmp.lt.s32.totalorder %s10, 5
      %p137 = pnand %p135, %p136
      %p138 = pneg %p137
      // Predicated region
      $region9: #{backbone_stem_forward.2} parent=5 // pred_check
        _
      $region10: #{backbone_stem_forward.2} parent=5 // pred_check_branch
        %140 = sbr.rel (%p137) target = $region12
      $region11: #{backbone_stem_forward.2} parent=5 // pred_region
        %s141 = ssub.s32 %s10, 1
        // Predicated region
        $region13: #{backbone_stem_forward.2} parent=11 // pred_check
          %p142 = pneg %p71
        $region14: #{backbone_stem_forward.2} parent=11 // pred_check_branch
          %144 = sbr.rel (%p142) target = $region16
        $region15: #{backbone_stem_forward.2} parent=11 // pred_region
          _
        $region16: #{backbone_stem_forward.2} parent=11 // pred_fallthru
          _
      $region12: #{backbone_stem_forward.2} parent=5 // pred_fallthru
        _
      %p145 = scmp.lt.s32.totalorder %s10, 4
      // Predicated region
      $region17: #{backbone_stem_forward.2} parent=5 // pred_check
        %p146 = pneg %p145
      $region18: #{backbone_stem_forward.2} parent=5 // pred_check_branch
        %148 = sbr.rel (%p146) target = $region20
      $region19: #{backbone_stem_forward.2} parent=5 // pred_region
        // Predicated region
        $region21: #{backbone_stem_forward.2} parent=19 // pred_check
          %p149 = pneg %p44
        $region22: #{backbone_stem_forward.2} parent=19 // pred_check_branch
          %151 = sbr.rel (%p149) target = $region24
        $region23: #{backbone_stem_forward.2} parent=19 // pred_region
          %s152 = sand.u32 %s34, 1
          %s153 = sand.u32 %s34, 1
          %s154 = smul.addr %s153, 20
          %s155 = scalar_lea.vmem [#allocation2], %s154
          %s156 = smul.addr %s17, 10
          %s157 = sadd.s32 %s18, %s156
          %s158 = smul.addr %s157, 4
          %s159 = scalar_lea.vmem %s0, %s158
          // Predicated region
          $region25: #{backbone_stem_forward.2} parent=23 // pred_check
            _
          $region26: #{backbone_stem_forward.2} parent=23 // pred_check_branch
            %161 = sbr.rel (0) target = $region28
          $region27: #{backbone_stem_forward.2} parent=23 // pred_region
            // Predicated region
            $region29: #{backbone_stem_forward.2} parent=27 // pred_check
              _
            $region30: #{backbone_stem_forward.2} parent=27 // pred_check_branch
              %163 = sbr.rel target = $region32
            $region31: #{backbone_stem_forward.2} parent=27 // pred_region
              // Predicated region
              $region44: #{backbone_stem_forward.2} parent=31 // pred_check
                _
              $region45: #{backbone_stem_forward.2} parent=31 // pred_check_branch
                %186 = sbr.rel (0) target = $region47
              $region46: #{backbone_stem_forward.2} parent=31 // pred_region
                loop: start=0, step=1, limit=1
                $region48: #{backbone_stem_forward.2} parent=46 // loop_pre_header
                  _
                $region49: #{backbone_stem_forward.2} parent=46 // loop_header
                  %s188 = sphi 0, %s192
                  %p189 = scmp.ge.s32.totalorder %s188, 1
                  %s193 = sphi %s159, %s159
                  %s194 = sphi %s155, %s155
                $region50: #{backbone_stem_forward.2} parent=46 // loop_header_branch
                  %191 = sbr.rel (%p189) target = $region54
                $region51: #{backbone_stem_forward.2} parent=46 // loop_body
                  _
                $region52: #{backbone_stem_forward.2} parent=46 // loop_footer
                  %s192 = sadd.s32 1, %s188
                $region53: #{backbone_stem_forward.2} parent=46 // loop_footer_branch
                  %187 = sbr.rel target = $region49
                $region54: #{backbone_stem_forward.2} parent=46 // loop_exit
                  _
                loop: start=0, step=1, limit=1
                $region55: #{backbone_stem_forward.2} parent=46 // loop_pre_header
                  _
                $region56: #{backbone_stem_forward.2} parent=46 // loop_header
                  %s197 = sphi 0, %s201
                  %p198 = scmp.ge.s32.totalorder %s197, 1
                  %s202 = sphi %s159, %s159
                  %s203 = sphi %s155, %s155
                $region57: #{backbone_stem_forward.2} parent=46 // loop_header_branch
                  %200 = sbr.rel (%p198) target = $region61
                $region58: #{backbone_stem_forward.2} parent=46 // loop_body
                  %v204 = vld [vmem:[%s202] sm:$0xf]
                  %205 = vst [vmem:[%s203] sm:$0xf] %v204
                  %v206 = vld [vmem:[%s202 + $0x8] sm:$0xf]
                  %207 = vst [vmem:[%s203 + $0x4] sm:$0xf] %v206
                  %v208 = vld [vmem:[%s202 + $0x10] sm:$0xf]
                  %209 = vst [vmem:[%s203 + $0x8] sm:$0xf] %v208
                  %v210 = vld [vmem:[%s202 + $0x18] sm:$0xf]
                  %211 = vst [vmem:[%s203 + $0xc] sm:$0xf] %v210
                  %v212 = vld [vmem:[%s202 + $0x20] sm:$0xf]
                  %213 = vst [vmem:[%s203 + $0x10] sm:$0xf] %v212
                $region59: #{backbone_stem_forward.2} parent=46 // loop_footer
                  %s201 = sadd.s32 1, %s197
                $region60: #{backbone_stem_forward.2} parent=46 // loop_footer_branch
                  %196 = sbr.rel target = $region56
                $region61: #{backbone_stem_forward.2} parent=46 // loop_exit
                  _
              $region47: #{backbone_stem_forward.2} parent=31 // pred_fallthru
                _
            $region32: #{backbone_stem_forward.2} parent=27 // pred_fallthru
              _
            // Predicated region
            $region33: #{backbone_stem_forward.2} parent=27 // pred_check
              _
            $region34: #{backbone_stem_forward.2} parent=27 // pred_check_branch
              %165 = sbr.rel (0) target = $region36
            $region35: #{backbone_stem_forward.2} parent=27 // pred_region
              loop: start=0, step=1, limit=1
              $region37: #{backbone_stem_forward.2} parent=35 // loop_pre_header
                _
              $region38: #{backbone_stem_forward.2} parent=35 // loop_header
                %s168 = sphi 0, %s172
                %p169 = scmp.ge.s32.totalorder %s168, 1
                %s173 = sphi %s159, %s159
                %s174 = sphi %s155, %s155
              $region39: #{backbone_stem_forward.2} parent=35 // loop_header_branch
                %171 = sbr.rel (%p169) target = $region43
              $region40: #{backbone_stem_forward.2} parent=35 // loop_body
                %v175 = vld [vmem:[%s173] sm:$0xf]
                %176 = vst [vmem:[%s174] sm:$0xf] %v175
                %v177 = vld [vmem:[%s173 + $0x8] sm:$0xf]
                %178 = vst [vmem:[%s174 + $0x4] sm:$0xf] %v177
                %v179 = vld [vmem:[%s173 + $0x10] sm:$0xf]
                %180 = vst [vmem:[%s174 + $0x8] sm:$0xf] %v179
                %v181 = vld [vmem:[%s173 + $0x18] sm:$0xf]
                %182 = vst [vmem:[%s174 + $0xc] sm:$0xf] %v181
                %v183 = vld [vmem:[%s173 + $0x20] sm:$0xf]
                %184 = vst [vmem:[%s174 + $0x10] sm:$0xf] %v183
              $region41: #{backbone_stem_forward.2} parent=35 // loop_footer
                %s172 = sadd.s32 1, %s168
              $region42: #{backbone_stem_forward.2} parent=35 // loop_footer_branch
                %167 = sbr.rel target = $region38
              $region43: #{backbone_stem_forward.2} parent=35 // loop_exit
                _
            $region36: #{backbone_stem_forward.2} parent=27 // pred_fallthru
              _
          $region28: #{backbone_stem_forward.2} parent=23 // pred_fallthru
            _
          %214 = vnop
        $region24: #{backbone_stem_forward.2} parent=19 // pred_fallthru
          _
      $region20: #{backbone_stem_forward.2} parent=5 // pred_fallthru
        _
      %p215 = scmp.le.s32.totalorder 1, %s10
      %p216 = scmp.lt.s32.totalorder %s10, 5
      %p217 = pnand %p215, %p216
      %p218 = pneg %p217
      // Predicated region
      $region62: #{backbone_stem_forward.2} parent=5 // pred_check
        _
      $region63: #{backbone_stem_forward.2} parent=5 // pred_check_branch
        %220 = sbr.rel (%p217) target = $region65
      $region64: #{backbone_stem_forward.2} parent=5 // pred_region
        %s221 = ssub.s32 %s10, 1
        %s222 = sand.u32 %s37, 1
        %s223 = sand.u32 %s37, 1
        %s224 = smul.addr %s223, 20
        %s225 = scalar_lea.vmem [#allocation2], %s224
        // Predicated region
        $region66: #{backbone_stem_forward.2} parent=64 // pred_check
          %p226 = pneg %p50
        $region67: #{backbone_stem_forward.2} parent=64 // pred_check_branch
          %228 = sbr.rel (%p226) target = $region69
        $region68: #{backbone_stem_forward.2} parent=64 // pred_region
          _
        $region69: #{backbone_stem_forward.2} parent=64 // pred_fallthru
          _
        %s229 = sand.u32 %s37, 1
        %s230 = sand.u32 %s37, 1
        %s231 = smul.addr %s230, 20
        %s232 = scalar_lea.vmem [#allocation2], %s231
        %p233 = pneg %p50
        %p234 = pneg %p47
        %p235 = pneg %p71
        %p236 = pneg %p68
        %p237 = pneg %p99
        %p238 = pneg %p96
        %p239 = scmp.lt.s32.totalorder %s19, 1
        %s240 = scalar_select %p239, %s19, 1
        %p241 = scmp.lt.s32.totalorder %s20, 1
        %s242 = scalar_select %p241, %s20, 1
        %s243 = smul.addr %s240, 2
        %s244 = sadd.s32 %s242, %s243
        %s245 = smul.addr %s244, 8
        %s246 = scalar_lea.vmem %s2, %s245
        %p247 = pneg %p127
        %p248 = pneg %p124
        %p249 = scmp.lt.s32.totalorder %s19, 1
        %s250 = scalar_select %p249, %s19, 1
        %p251 = scmp.lt.s32.totalorder %s20, 1
        %s252 = scalar_select %p251, %s20, 1
        %s253 = smul.addr %s250, 2
        %s254 = sadd.s32 %s252, %s253
        %s255 = smul.addr %s254, 8
        %s256 = scalar_lea.vmem %s3, %s255
        %p257 = scmp.lt.s32.totalorder %s19, 1
        %s258 = scalar_select %p257, %s19, 1
        %p259 = scmp.lt.s32.totalorder %s20, 1
        %s260 = scalar_select %p259, %s20, 1
        %s261 = smul.addr %s258, 2
        %s262 = sadd.s32 %s260, %s261
        %s263 = smul.addr %s262, 8
        %s264 = scalar_lea.vmem %s2, %s263
        %p265 = scmp.lt.s32.totalorder %s19, 1
        %s266 = scalar_select %p265, %s19, 1
        %p267 = scmp.lt.s32.totalorder %s20, 1
        %s268 = scalar_select %p267, %s20, 1
        %s269 = smul.addr %s266, 2
        %s270 = sadd.s32 %s268, %s269
        %s271 = smul.addr %s270, 8
        %s272 = scalar_lea.vmem %s3, %s271
        %v274 = vld [vmem:[%s1] sm:$0xf]
        %v275 = vld [vmem:[%s225] sm:$0xf]
        %v276 = vld [vmem:[%s225 + $0x4] sm:$0xf]
        %v277 = vld [vmem:[%s225 + $0x8] sm:$0xf]
        %v278 = vld [vmem:[%s225 + $0xc] sm:$0xf]
        %v279 = vld [vmem:[%s225 + $0x10] sm:$0xf]
        %v285 = vunpack.c.l.b16 %v275
        %v286 = vunpack.c.l.b16 %v276
        %v287 = vunpack.c.l.b16 %v277
        %v288 = vunpack.c.l.b16 %v278
        %v289 = vunpack.c.l.b16 %v279
        %v290 = vpack.c.b16 %v286, %v285
        %v291 = vpack.c.b16 %v288, %v287
        %v292 = vpack.c.b16 %v289, %v289
        %vm295 = vcmask 326656
        %v297 = vsel %vm295, %v274, 0
        %vm299 = vcmask 1043456
        %v301 = vsel %vm299, %v292, 0
        %303 = vmatprep.subr.bf16.mxu0 0
        %304 = vmatpush1.bf16.msra.mxu0 %v290
        %305 = vmatprep.subr.bf16.mxu0 0
        %306 = vmatpush1.bf16.msra.mxu0 %v291
        %307 = vmatprep.subr.bf16.mxu0 0
        %308 = vmatpush1.bf16.msra.mxu0 %v301
        %309 = vmatprep.subr.bf16.mxu0 0
        %310 = vmatpush1.bf16.msra.mxu0 0
        %311 = vmatprep.subr.bf16.mxu0 0
        %312 = vmatpush1.bf16.msra.mxu0 0
        %313 = vmatprep.subr.bf16.mxu0 0
        %314 = vmatpush1.bf16.msra.mxu0 0
        %315 = vmatprep.subr.bf16.mxu0 0
        %316 = vmatpush1.bf16.msra.mxu0 0
        %317 = vmatprep.subr.bf16.mxu0 0
        %318 = vmatpush1.bf16.msra.mxu0 0
        %319 = vmatprep.subr.bf16.mxu0 0
        %320 = vmatpush1.bf16.msra.mxu0 0
        %321 = vmatprep.subr.bf16.mxu0 0
        %322 = vmatpush1.bf16.msra.mxu0 0
        %323 = vmatprep.subr.bf16.mxu0 0
        %324 = vmatpush1.bf16.msra.mxu0 0
        %325 = vmatprep.subr.bf16.mxu0 0
        %326 = vmatpush1.bf16.msra.mxu0 0
        %327 = vmatprep.subr.bf16.mxu0 0
        %328 = vmatpush1.bf16.msra.mxu0 0
        %329 = vmatprep.subr.bf16.mxu0 0
        %330 = vmatpush1.bf16.msra.mxu0 0
        %331 = vmatprep.subr.bf16.mxu0 0
        %332 = vmatpush1.bf16.msra.mxu0 0
        %333 = vmatprep.subr.bf16.mxu0 0
        %334 = vmatpush1.bf16.msra.mxu0 0
        %335 = vmatprep.mubr.bf16.mxu0 0
        %336 = vmatmul.mubr.bf16.gmra.mrb[0].mxu0 %v297
        %v337 = vpop.f32.mrb[0].mxu0
        %v338 = vadd.f32 0.0, %v337
        %v339 = vpop.f32.mrb[0].mxu0
        %v340 = vpop.f32.mrb[0].mxu0
        %v341 = vpop.f32.mrb[0].mxu0
        %342 = vdwg.mxu0
        %343 = vadd.xlane.f32.xlu0 %v338
        %v344 = vpop.xlane.xlu0 %343
        %v345 = vmul.f32 %v338, %v338
        %346 = vadd.xlane.f32.xlu0 %v345
        %v347 = vpop.xlane.xlu0 %346
        %348 = vst [vmem:[%s264] sm:$0xff] %v344
        %349 = vst [vmem:[%s272] sm:$0xff] %v347
        %p350 = scmp.lt.s32.totalorder %s19, 1
        %s351 = scalar_select %p350, %s19, 1
        %p352 = scmp.lt.s32.totalorder %s20, 1
        %s353 = scalar_select %p352, %s20, 1
        %s354 = smul.addr %s351, 2
        %s355 = sadd.s32 %s353, %s354
        %s356 = smul.addr %s355, 8
        %s357 = scalar_lea.vmem %s2, %s356
        %p358 = scmp.lt.s32.totalorder %s19, 1
        %s359 = scalar_select %p358, %s19, 1
        %p360 = scmp.lt.s32.totalorder %s20, 1
        %s361 = scalar_select %p360, %s20, 1
        %s362 = smul.addr %s359, 2
        %s363 = sadd.s32 %s361, %s362
        %s364 = smul.addr %s363, 8
        %s365 = scalar_lea.vmem %s3, %s364
        // Predicated region
        $region70: #{backbone_stem_forward.2} parent=64 // pred_check
          %p366 = pneg %p96
        $region71: #{backbone_stem_forward.2} parent=64 // pred_check_branch
          %368 = sbr.rel (%p366) target = $region73
        $region72: #{backbone_stem_forward.2} parent=64 // pred_region
          _
        $region73: #{backbone_stem_forward.2} parent=64 // pred_fallthru
          _
        // Predicated region
        $region74: #{backbone_stem_forward.2} parent=64 // pred_check
          %p369 = pneg %p124
        $region75: #{backbone_stem_forward.2} parent=64 // pred_check_branch
          %371 = sbr.rel (%p369) target = $region77
        $region76: #{backbone_stem_forward.2} parent=64 // pred_region
          _
        $region77: #{backbone_stem_forward.2} parent=64 // pred_fallthru
          _
      $region65: #{backbone_stem_forward.2} parent=5 // pred_fallthru
        _
      %p372 = scmp.le.s32.totalorder 2, %s10
      // Predicated region
      $region78: #{backbone_stem_forward.2} parent=5 // pred_check
        %p373 = pneg %p372
      $region79: #{backbone_stem_forward.2} parent=5 // pred_check_branch
        %375 = sbr.rel (%p373) target = $region81
      $region80: #{backbone_stem_forward.2} parent=5 // pred_region
        %s376 = ssub.s32 %s10, 2
        // Predicated region
        $region82: #{backbone_stem_forward.2} parent=80 // pred_check
          %p377 = pneg %p102
        $region83: #{backbone_stem_forward.2} parent=80 // pred_check_branch
          %379 = sbr.rel (%p377) target = $region85
        $region84: #{backbone_stem_forward.2} parent=80 // pred_region
          %p380 = scmp.lt.s32.totalorder %s21, 1
          %s381 = scalar_select %p380, %s21, 1
          %p382 = scmp.lt.s32.totalorder %s22, 1
          %s383 = scalar_select %p382, %s22, 1
          %s384 = smul.addr %s381, 2
          %s385 = sadd.s32 %s383, %s384
          %s386 = smul.addr %s385, 8
          %s387 = scalar_lea.vmem %s2, %s386
        $region85: #{backbone_stem_forward.2} parent=80 // pred_fallthru
          _
        // Predicated region
        $region86: #{backbone_stem_forward.2} parent=80 // pred_check
          %p388 = pneg %p130
        $region87: #{backbone_stem_forward.2} parent=80 // pred_check_branch
          %390 = sbr.rel (%p388) target = $region89
        $region88: #{backbone_stem_forward.2} parent=80 // pred_region
          %p391 = scmp.lt.s32.totalorder %s21, 1
          %s392 = scalar_select %p391, %s21, 1
          %p393 = scmp.lt.s32.totalorder %s22, 1
          %s394 = scalar_select %p393, %s22, 1
          %s395 = smul.addr %s392, 2
          %s396 = sadd.s32 %s394, %s395
          %s397 = smul.addr %s396, 8
          %s398 = scalar_lea.vmem %s3, %s397
        $region89: #{backbone_stem_forward.2} parent=80 // pred_fallthru
          _
      $region81: #{backbone_stem_forward.2} parent=5 // pred_fallthru
        _
    $region6: #{backbone_stem_forward.2} parent=1 // loop_footer
      %s14 = sadd.s32 1, %s10
    $region7: #{backbone_stem_forward.2} parent=1 // loop_footer_branch
      %9 = sbr.rel target = $region3
    $region8: #{backbone_stem_forward.2} parent=1 // loop_exit
      _

</llo_original>
